<compile_context>
chip_gen: v7x
topology: tpu7x:2x2x1
jax: 0.10.0
libtpu: 0.0.40
codegen_flags: <defaults>
</compile_context>

<pallas_src>
import jax
import jax.numpy as jnp
from jax.experimental import pallas as pl
from jax.experimental.pallas import tpu as pltpu


def _round_up(x, m):
    return (x + m - 1) // m * m


def _balanced_tile(n, max_tile, align):
    """Tile <= max_tile, multiple of `align`, balanced so n_tiles*tile ~ n."""
    n_tiles = -(-n // max_tile)
    return _round_up(-(-n // n_tiles), align)


def _pick_hw_plan():
    """(vmem_limit_bytes, tm_max, tk_max) per TPU generation."""
    try:
        kind = jax.devices()[0].device_kind.lower()
    except Exception:
        kind = ""
    if "v7" in kind:
        # 64 MiB VMEM per TensorCore: tighter cap, smaller tiles, rely on 2 TCs.
        return 44 * 1024 * 1024, 256, 512
    if "v5" in kind or "v6" in kind:
        # 128 MiB VMEM parts: big tiles amortize per-step overhead and halve
        # the number of times S is re-streamed.
        return 96 * 1024 * 1024, 512, 1024
    return 48 * 1024 * 1024, 256, 512


# -----------------------------------------------------------------------------
# Prologue kernel (transform-first path): H = X @ W, tiled over source rows.
# -----------------------------------------------------------------------------
def _xw_kernel(x_ref, w_ref, o_ref):
    o_ref[...] = jnp.dot(
        x_ref[...], w_ref[...], preferred_element_type=jnp.float32
    ).astype(o_ref.dtype)


def _transform_features(x_p, w_p, *, tile_rows, vmem_limit):
    n_rows, in_p = x_p.shape
    _, out_p = w_p.shape
    return pl.pallas_call(
        _xw_kernel,
        out_shape=jax.ShapeDtypeStruct((n_rows, out_p), x_p.dtype),
        grid_spec=pltpu.PrefetchScalarGridSpec(
            num_scalar_prefetch=0,
            grid=(n_rows // tile_rows,),
            in_specs=[
                pl.BlockSpec((tile_rows, in_p), lambda r: (r, 0)),
                pl.BlockSpec((in_p, out_p), lambda r: (0, 0)),
            ],
            out_specs=pl.BlockSpec((tile_rows, out_p), lambda r: (r, 0)),
        ),
        compiler_params=pltpu.CompilerParams(
            dimension_semantics=("parallel",),
            vmem_limit_bytes=vmem_limit,
        ),
    )(x_p, w_p)


# -----------------------------------------------------------------------------
# Main aggregation kernel: grid = (n_dst_tiles, n_src_tiles), accumulates
# A_tile @ S_tile into an f32 lane-dense scratch; the epilogue (optional
# transform, bias, ReLU, residual Linear + ReLU, add) runs at the last k step.
# -----------------------------------------------------------------------------
def _make_main_kernel(transform_first, use_bias, residual, s_resident, tk):
    def kernel(*refs):
        it = iter(refs)
        a_ref = next(it)                          # (TM, TK) f32 or bf16
        s_ref = next(it)                          # (TK|NSRC, S) bf16
        w_ref = None if transform_first else next(it)   # (INP, OUTP) f32
        b_ref = next(it) if use_bias else None           # (1, OUTP) f32
        if residual:
            xd_ref = next(it)                     # (TM, INP) bf16
            wres_ref = next(it)                   # (INP, OUTP) bf16
            bres_ref = next(it)                   # (1, OUTP) f32
        o_ref = next(it)                          # (TM, OUTP) f32
        acc_ref = next(it)                        # (TM, ACC) f32 scratch

        k = pl.program_id(1)

        @pl.when(k == 0)
        def _():
            acc_ref[...] = jnp.zeros_like(acc_ref)

        # Cast adjacency tile to bf16 in-kernel (cheap VPU work under the MXU).
        a_blk = a_ref[...].astype(jnp.bfloat16)
        if s_resident:
            row0 = pl.multiple_of(k * tk, tk)
            s_blk = s_ref[pl.ds(row0, tk), :]
        else:
            s_blk = s_ref[...]
        acc_ref[...] += jnp.dot(a_blk, s_blk, preferred_element_type=jnp.float32)

        @pl.when(k == pl.num_programs(1) - 1)
        def _():
            rst = acc_ref[...]
            if not transform_first:
                # aggregate-then-transform: (A @ X) @ W, kept in f32 (no bf16
                # round-trip of the accumulator).
                rst = jnp.dot(rst, w_ref[...], preferred_element_type=jnp.float32)
            if use_bias:
                rst = rst + b_ref[...]
            rst = jnp.maximum(rst, 0.0)           # F.relu inside HeteroGraphConv
            if residual:
                res = jnp.dot(xd_ref[...], wres_ref[...],
                              preferred_element_type=jnp.float32)
                res = jnp.maximum(res + bres_ref[...], 0.0)
                rst = rst + res
            # nn.Dropout(0.0) == identity; batchnorm disabled in this config.
            o_ref[...] = rst.astype(o_ref.dtype)

    return kernel


def hetero_gcn_layer(adj_mean, feats, weight, bias=None, w_res=None, b_res=None,
                     *, use_bias, residual, compute_dtype=jnp.bfloat16):
    """Pallas implementation of HeteroGCNLayer.forward (eval mode)."""
    n_dst, n_src = adj_mean.shape
    in_feats, out_feats = weight.shape
    transform_first = in_feats > out_feats
    if residual:
        assert n_dst == n_src, "residual connection requires n_src == n_dst"

    f32 = jnp.float32
    cdt = compute_dtype
    vmem_limit, tm_max, tk_max = _pick_hw_plan()

    # ---- tile plan: lane-dense channels, balanced (16,128)-aligned tiles ----
    in_p = _round_up(in_feats, 128)
    out_p = _round_up(out_feats, 128)
    tm = n_dst if n_dst <= tm_max else _balanced_tile(n_dst, tm_max, 16)
    tk = n_src if n_src <= tk_max else _balanced_tile(n_src, tk_max, 128)
    n_dst_p = _round_up(n_dst, tm)
    n_src_p = _round_up(n_src, tk)
    n_k = n_src_p // tk
    s_cols = out_p if transform_first else in_p
    acc_cols = s_cols                       # lane-dense f32 accumulator

    # ---- adjacency: no wrapper pad/cast pass unless padding is required -----
    if (n_dst_p, n_src_p) != (n_dst, n_src):
        a_op = jnp.zeros((n_dst_p, n_src_p), cdt).at[:n_dst, :n_src].set(
            adj_mean.astype(cdt))
    else:
        a_op = adj_mean                     # f32, cast per-tile in the kernel

    # ---- features / weights (small O(N*F) pads, zero padding keeps math exact)
    x_src_p = jnp.zeros((n_src_p, in_p), cdt).at[:n_src, :in_feats].set(
        feats.astype(cdt))

    if transform_first:
        w_bf = jnp.zeros((in_p, out_p), cdt).at[:in_feats, :out_feats].set(
            weight.astype(cdt))
        # Hoisted once: H = X @ W, then stream H as the RHS of A @ H.
        s_p = _transform_features(x_src_p, w_bf, tile_rows=tk,
                                  vmem_limit=vmem_limit)
    else:
        w_f32 = jnp.zeros((in_p, out_p), f32).at[:in_feats, :out_feats].set(
            weight.astype(f32))
        s_p = x_src_p

    # ---- decide whether S fits resident in VMEM (read exactly once) ---------
    itemsize_a = jnp.dtype(a_op.dtype).itemsize
    fixed_bytes = (
        tm * tk * itemsize_a * 2            # A (double-buffered)
        + tm * out_p * 4 * 2                # output block
        + tm * acc_cols * 4                 # accumulator scratch
        + (0 if transform_first else in_p * out_p * 4 * 2)
        + (out_p * 4 * 2 if use_bias else 0)
        + ((tm * in_p * 2 * 2 + in_p * out_p * 2 * 2 + out_p * 4 * 2)
           if residual else 0)
    )
    s_full_bytes = n_src_p * s_cols * 2 * 2
    s_resident = (n_k > 1) and (fixed_bytes + s_full_bytes
                                <= int(vmem_limit * 0.8))

    # ---- operands / specs ----------------------------------------------------
    operands = [a_op, s_p]
    in_specs = [pl.BlockSpec((tm, tk), lambda i, k: (i, k))]
    if s_resident:
        in_specs.append(pl.BlockSpec((n_src_p, s_cols), lambda i, k: (0, 0)))
    else:
        in_specs.append(pl.BlockSpec((tk, s_cols), lambda i, k: (k, 0)))
    if not transform_first:
        operands.append(w_f32)
        in_specs.append(pl.BlockSpec((in_p, out_p), lambda i, k: (0, 0)))
    if use_bias:
        b_p = jnp.zeros((1, out_p), f32).at[0, :out_feats].set(bias.astype(f32))
        operands.append(b_p)
        in_specs.append(pl.BlockSpec((1, out_p), lambda i, k: (0, 0)))
    if residual:
        x_dst_p = jnp.zeros((n_dst_p, in_p), cdt).at[:n_dst, :in_feats].set(
            feats.astype(cdt))
        wres_p = jnp.zeros((in_p, out_p), cdt).at[:in_feats, :out_feats].set(
            w_res.astype(cdt))
        bres_p = jnp.zeros((1, out_p), f32).at[0, :out_feats].set(
            b_res.astype(f32))
        operands += [x_dst_p, wres_p, bres_p]
        in_specs += [
            pl.BlockSpec((tm, in_p), lambda i, k: (i, 0)),
            pl.BlockSpec((in_p, out_p), lambda i, k: (0, 0)),
            pl.BlockSpec((1, out_p), lambda i, k: (0, 0)),
        ]

    kernel = _make_main_kernel(transform_first, use_bias, residual,
                               s_resident, tk)

    out_padded = pl.pallas_call(
        kernel,
        # f32 output for module fidelity (bf16 would halve writeback if the
        # consumer tolerates it).
        out_shape=jax.ShapeDtypeStruct((n_dst_p, out_p), f32),
        grid_spec=pltpu.PrefetchScalarGridSpec(
            num_scalar_prefetch=0,
            grid=(n_dst_p // tm, n_k),
            in_specs=in_specs,
            out_specs=pl.BlockSpec((tm, out_p), lambda i, k: (i, 0)),
            scratch_shapes=[pltpu.VMEM((tm, acc_cols), f32)],
        ),
        compiler_params=pltpu.CompilerParams(
            dimension_semantics=("parallel", "arbitrary"),
            vmem_limit_bytes=vmem_limit,
        ),
    )(*operands)

    return out_padded[:n_dst, :out_feats]


# -----------------------------------------------------------------------------
# Pure-JAX reference mirroring the PyTorch forward semantics.
# -----------------------------------------------------------------------------
def hetero_gcn_layer_ref(adj_mean, feats, weight, bias, w_res, b_res,
                         *, use_bias, residual, quantize_like_kernel=False):
    def q(t):
        if quantize_like_kernel:
            return t.astype(jnp.bfloat16).astype(jnp.float32)
        return t

    in_f, out_f = weight.shape
    if in_f > out_f:
        rst = q(adj_mean) @ q(q(feats) @ q(weight))
    else:
        rst = (q(adj_mean) @ q(feats)) @ weight   # epilogue matmul stays f32
    if use_bias:
        rst = rst + bias
    rst = jax.nn.relu(rst)
    if residual:
        res = jax.nn.relu(q(feats) @ q(w_res) + b_res)
        rst = rst + res
    return rst


# -----------------------------------------------------------------------------
# Test harness
# -----------------------------------------------------------------------------
def xavier_uniform(key, shape):
    fan_in, fan_out = shape
    limit = (6.0 / (fan_in + fan_out)) ** 0.5
    return jax.random.uniform(key, shape, jnp.float32, -limit, limit)


def make_graph_and_feats(key, n_nodes, in_feats):
    """Random homogeneous graph (src_type == dst_type) + features."""
    k_adj, k_feat = jax.random.split(key)
    adj = jax.random.bernoulli(k_adj, 0.3, (n_nodes, n_nodes)).astype(jnp.float32)
    adj = jnp.maximum(adj, jnp.eye(n_nodes, dtype=jnp.float32))   # self-loops
    deg = jnp.sum(adj, axis=1, keepdims=True)
    adj_mean = adj / deg                                          # mean aggregation
    feats = jax.random.normal(k_feat, (n_nodes, in_feats), jnp.float32)
    return adj_mean, feats


def run_config(key, n_nodes, in_feats, out_feats, use_bias, residual):
    kg, kw, kb, kwr, kbr = jax.random.split(key, 5)
    adj_mean, feats = make_graph_and_feats(kg, n_nodes, in_feats)
    weight = xavier_uniform(kw, (in_feats, out_feats))            # HeteroGraphConv.weight
    # init.zeros_ would give a zero bias; use a small non-zero one so the bias
    # path is actually exercised by the correctness check.
    bias = 0.05 * jax.random.normal(kb, (out_feats,), jnp.float32)
    w_res = xavier_uniform(kwr, (in_feats, out_feats))            # nn.Linear weight
    b_res = 0.01 * jax.random.normal(kbr, (out_feats,), jnp.float32)

    out = hetero_gcn_layer(adj_mean, feats, weight, bias, w_res, b_res,
                           use_bias=use_bias, residual=residual)
    out = jax.block_until_ready(out)
    assert out.shape == (n_nodes, out_feats)

    # Tight check vs. a reference that mirrors the kernel's bf16 quantization.
    ref_q = hetero_gcn_layer_ref(adj_mean, feats, weight, bias, w_res, b_res,
                                 use_bias=use_bias, residual=residual,
                                 quantize_like_kernel=True)
    err_q = float(jnp.max(jnp.abs(out - ref_q)))
    assert jnp.allclose(out, ref_q, atol=2e-2, rtol=2e-2), \
        f"mismatch vs bf16-mirror reference: max err {err_q}"

    # Loose sanity check vs. the full-f32 reference (inputs were cast to bf16).
    ref_f = hetero_gcn_layer_ref(adj_mean, feats, weight, bias, w_res, b_res,
                                 use_bias=use_bias, residual=residual,
                                 quantize_like_kernel=False)
    err_f = float(jnp.max(jnp.abs(out - ref_f)))
    assert jnp.allclose(out, ref_f, atol=2e-1, rtol=2e-1), \
        f"mismatch vs f32 reference: max err {err_f}"
    return out


if __name__ == "__main__":
    key = jax.random.PRNGKey(0)
    k1, k2, k3 = jax.random.split(key, 3)

    # Config A: in_feats > out_feats -> transform-then-aggregate branch,
    #           with bias and residual connection enabled.
    run_config(k1, n_nodes=64, in_feats=32, out_feats=16,
               use_bias=True, residual=True)

    # Config B: in_feats <= out_feats -> aggregate-then-transform branch,
    #           module defaults (no bias, no residual).
    run_config(k2, n_nodes=64, in_feats=16, out_feats=32,
               use_bias=False, residual=False)

    # Config C: larger graph to exercise multi-tile reduction, the resident-S
    #           path, prologue tiling and the in-kernel f32->bf16 adjacency cast.
    run_config(k3, n_nodes=1536, in_feats=64, out_feats=32,
               use_bias=True, residual=True)

    print("KERNEL_OK")
</pallas_src>

<mosaic_0001>
module attributes {stable_mosaic.version = 11 : i64} {
  func.func @_xw_kernel(%arg0: i32, %arg1: memref<64x128xbf16, #tpu.memory_space<vmem>>, %arg2: memref<128x128xbf16, #tpu.memory_space<vmem>>, %arg3: memref<64x128xbf16, #tpu.memory_space<vmem>>) attributes {dimension_semantics = [#tpu.dimension_semantics<parallel>], iteration_bounds = array<i64: 1>, scalar_prefetch = 0 : i64, scratch_operands = 0 : i64, tpu.core_type = #tpu.core_type<tc>, window_params = [{transform_indices = @transform_0, window_bounds = array<i64: 64, 128>}, {pipeline_mode = #tpu.pipeline_mode<synchronous>, transform_indices = @transform_1, window_bounds = array<i64: 128, 128>}, {transform_indices = @transform_2, window_bounds = array<i64: 64, 128>}]} {
    %c0 = arith.constant 0 : index
    %c0_0 = arith.constant 0 : index
    %0 = vector.load %arg1[%c0, %c0_0] : memref<64x128xbf16, #tpu.memory_space<vmem>>, vector<64x128xbf16>
    %c0_1 = arith.constant 0 : index
    %c0_2 = arith.constant 0 : index
    %1 = vector.load %arg2[%c0_1, %c0_2] : memref<128x128xbf16, #tpu.memory_space<vmem>>, vector<128x128xbf16>
    %cst = arith.constant dense<0.000000e+00> : vector<64x128xf32>
    %2 = tpu.matmul %0, %1, %cst {dimension_numbers = #tpu.dot_dimension_numbers<[1], [0], [0], [1], [0, 0, 1, 1], [], []>} : vector<64x128xbf16>, vector<128x128xbf16>, vector<64x128xf32> -> vector<64x128xf32>
    %3 = arith.truncf %2 : vector<64x128xf32> to vector<64x128xbf16>
    %c0_3 = arith.constant 0 : index
    %c0_4 = arith.constant 0 : index
    %4 = vector.load %arg3[%c0_3, %c0_4] : memref<64x128xbf16, #tpu.memory_space<vmem>>, vector<64x128xbf16>
    tpu.vector_store %arg3[%c0_3, %c0_4], %3 {strides = array<i32>} : memref<64x128xbf16, #tpu.memory_space<vmem>>, vector<64x128xbf16>,
    return
  }
  func.func @transform_0(%arg0: i32) -> (i32, i32) {
    %c0_i32 = arith.constant 0 : i32
    %c0_i32_0 = arith.constant 0 : i32
    return %arg0, %c0_i32 : i32, i32
  }
  func.func @transform_1(%arg0: i32) -> (i32, i32) {
    %c0_i32 = arith.constant 0 : i32
    %c0_i32_0 = arith.constant 0 : i32
    %c0_i32_1 = arith.constant 0 : i32
    return %c0_i32, %c0_i32_0 : i32, i32
  }
  func.func @transform_2(%arg0: i32) -> (i32, i32) {
    %c0_i32 = arith.constant 0 : i32
    %c0_i32_0 = arith.constant 0 : i32
    return %arg0, %c0_i32 : i32, i32
  }
}

</mosaic_0001>

<llo_original>
// kernel: tpu_custom_call.1
$region0: #{tpu_custom_call.1}
  #allocation0 [shape = 'u32[]', space=smem, size = 0x4, offset = 0x4, fixed_abs, tag = 'smem constant byte address 0x4 - core index']
  #allocation1 [shape = 'u32[144,128]{1,0:T(1,128)}', space=vmem, size = 0x12000, scoped, tag = 'internal scratch']
  %s0 = inlined_call_operand.hbm [shape: bf16[64,128], index: 0, kind: input, shape index: {}]
  %s1 = inlined_call_operand.hbm [shape: bf16[128,128], index: 1, kind: input, shape index: {}]
  %s2 = inlined_call_operand.hbm [shape: bf16[64,128], index: 2, kind: output, shape index: {}]
  %s3 = sld [smem:[#allocation0]]
  $region26: #{tpu_custom_call.1} parent=0
    _
  %s5 = ssub.s32 1, %s3
  %s6 = scalar_select 0, %s5, %s3
  $region1: #{tpu_custom_call.1} parent=0
    #allocation2 [shape = 'u8[16384]{0}', space=vmem, size = 0x4000, scoped, tag = 'input window, operand 0, single buffered']
    #allocation3 [shape = 's32[1]{0}', space=sflag, size = 0x4, scoped, tag = 'scoped memory for tpu_custom_call.1']
    #allocation4 [shape = 's32[1]{0}', space=sflag, size = 0x4, scoped, tag = 'scoped memory for tpu_custom_call.1']
    #allocation5 [shape = 'u8[32768]{0}', space=vmem, size = 0x8000, scoped, tag = 'input window, operand 1, single buffered']
    #allocation6 [shape = 's32[1]{0}', space=sflag, size = 0x4, scoped, tag = 'scoped memory for tpu_custom_call.1']
    #allocation7 [shape = 'u8[16384]{0}', space=vmem, size = 0x4000, scoped, tag = 'output window, operand 0, single buffered']
    %7 = vsyncpa [#allocation3], 0
    %8 = vsyncpa [#allocation6], 0
    %9 = vsyncpa [#allocation4], 0
    // Predicated region
    $region2: #{tpu_custom_call.1} parent=1 // pred_check
      _
    $region3: #{tpu_custom_call.1} parent=1 // pred_check_branch
      %11 = sbr.rel (0) target = $region5
    $region4: #{tpu_custom_call.1} parent=1 // pred_region
      %s13 = ssub.s32 512, 512
      %14 = vsyncadd [#allocation3], %s13
      %s15 = sshll.u32 [#allocation2], 4
      %s16 = int_to_ptr.vmem [resolvable:$true] %s15
      %21 = dma.hbm_to_vmem [thread:$0]  %s0, 512, %s16, [#allocation3], 64, 64, 4
    $region5: #{tpu_custom_call.1} parent=1 // pred_fallthru
      _
    // Predicated region
    $region6: #{tpu_custom_call.1} parent=1 // pred_check
      _
    $region7: #{tpu_custom_call.1} parent=1 // pred_check_branch
      %23 = sbr.rel (0) target = $region9
    $region8: #{tpu_custom_call.1} parent=1 // pred_region
      %s25 = ssub.s32 1024, 1024
      %26 = vsyncadd [#allocation6], %s25
      %s27 = sshll.u32 [#allocation5], 4
      %s28 = int_to_ptr.vmem [resolvable:$true] %s27
      %33 = dma.hbm_to_vmem [thread:$0]  %s1, 1024, %s28, [#allocation6], 64, 64, 4
    $region9: #{tpu_custom_call.1} parent=1 // pred_fallthru
      _
    // Predicated region
    $region10: #{tpu_custom_call.1} parent=1 // pred_check
      _
    $region11: #{tpu_custom_call.1} parent=1 // pred_check_branch
      %35 = sbr.rel (0) target = $region13
    $region12: #{tpu_custom_call.1} parent=1 // pred_region
      %36 = dma.done [#allocation3], 512
    $region13: #{tpu_custom_call.1} parent=1 // pred_fallthru
      _
    // Predicated region
    $region14: #{tpu_custom_call.1} parent=1 // pred_check
      _
    $region15: #{tpu_custom_call.1} parent=1 // pred_check_branch
      %38 = sbr.rel (0) target = $region17
    $region16: #{tpu_custom_call.1} parent=1 // pred_region
      %39 = dma.done [#allocation6], 1024
    $region17: #{tpu_custom_call.1} parent=1 // pred_fallthru
      _
    %v41 = vld [vmem:[#allocation2] sm:$0xf]
    %v42 = vld [vmem:[#allocation2 + $0x4] sm:$0xf]
    %v43 = vld [vmem:[#allocation2 + $0x8] sm:$0xf]
    %v44 = vld [vmem:[#allocation2 + $0xc] sm:$0xf]
    %v45 = vld [vmem:[#allocation2 + $0x10] sm:$0xf]
    %v46 = vld [vmem:[#allocation2 + $0x14] sm:$0xf]
    %v47 = vld [vmem:[#allocation2 + $0x18] sm:$0xf]
    %v48 = vld [vmem:[#allocation2 + $0x1c] sm:$0xf]
    %v49 = vld [vmem:[#allocation5] sm:$0xf]
    %v50 = vld [vmem:[#allocation5 + $0x4] sm:$0xf]
    %v51 = vld [vmem:[#allocation5 + $0x8] sm:$0xf]
    %v52 = vld [vmem:[#allocation5 + $0xc] sm:$0xf]
    %v53 = vld [vmem:[#allocation5 + $0x10] sm:$0xf]
    %v54 = vld [vmem:[#allocation5 + $0x14] sm:$0xf]
    %v55 = vld [vmem:[#allocation5 + $0x18] sm:$0xf]
    %v56 = vld [vmem:[#allocation5 + $0x1c] sm:$0xf]
    %v57 = vld [vmem:[#allocation5 + $0x20] sm:$0xf]
    %v58 = vld [vmem:[#allocation5 + $0x24] sm:$0xf]
    %v59 = vld [vmem:[#allocation5 + $0x28] sm:$0xf]
    %v60 = vld [vmem:[#allocation5 + $0x2c] sm:$0xf]
    %v61 = vld [vmem:[#allocation5 + $0x30] sm:$0xf]
    %v62 = vld [vmem:[#allocation5 + $0x34] sm:$0xf]
    %v63 = vld [vmem:[#allocation5 + $0x38] sm:$0xf]
    %v64 = vld [vmem:[#allocation5 + $0x3c] sm:$0xf]
    %v73 = vunpack.c.l.b16 %v41
    %v74 = vunpack.c.l.b16 %v42
    %v75 = vunpack.c.l.b16 %v43
    %v76 = vunpack.c.l.b16 %v44
    %v77 = vunpack.c.l.b16 %v45
    %v78 = vunpack.c.l.b16 %v46
    %v79 = vunpack.c.l.b16 %v47
    %v80 = vunpack.c.l.b16 %v48
    %v81 = vpack.c.b16 %v74, %v73
    %v82 = vpack.c.b16 %v76, %v75
    %v83 = vpack.c.b16 %v78, %v77
    %v84 = vpack.c.b16 %v80, %v79
    %v105 = vunpack.c.l.b16 %v49
    %v106 = vunpack.c.l.b16 %v50
    %v107 = vunpack.c.l.b16 %v51
    %v108 = vunpack.c.l.b16 %v52
    %v109 = vunpack.c.l.b16 %v53
    %v110 = vunpack.c.l.b16 %v54
    %v111 = vunpack.c.l.b16 %v55
    %v112 = vunpack.c.l.b16 %v56
    %v113 = vunpack.c.l.b16 %v57
    %v114 = vunpack.c.l.b16 %v58
    %v115 = vunpack.c.l.b16 %v59
    %v116 = vunpack.c.l.b16 %v60
    %v117 = vunpack.c.l.b16 %v61
    %v118 = vunpack.c.l.b16 %v62
    %v119 = vunpack.c.l.b16 %v63
    %v120 = vunpack.c.l.b16 %v64
    %v121 = vpack.c.b16 %v106, %v105
    %v122 = vpack.c.b16 %v108, %v107
    %v123 = vpack.c.b16 %v110, %v109
    %v124 = vpack.c.b16 %v112, %v111
    %v125 = vpack.c.b16 %v114, %v113
    %v126 = vpack.c.b16 %v116, %v115
    %v127 = vpack.c.b16 %v118, %v117
    %v128 = vpack.c.b16 %v120, %v119
    %137 = vmatprep.subr.bf16.mxu0 0
    %138 = vmatpush1.bf16.msra.mxu0 %v121
    %139 = vmatprep.subr.bf16.mxu0 0
    %140 = vmatpush1.bf16.msra.mxu0 %v122
    %141 = vmatprep.subr.bf16.mxu0 0
    %142 = vmatpush1.bf16.msra.mxu0 %v123
    %143 = vmatprep.subr.bf16.mxu0 0
    %144 = vmatpush1.bf16.msra.mxu0 %v124
    %145 = vmatprep.subr.bf16.mxu0 0
    %146 = vmatpush1.bf16.msra.mxu0 %v125
    %147 = vmatprep.subr.bf16.mxu0 0
    %148 = vmatpush1.bf16.msra.mxu0 %v126
    %149 = vmatprep.subr.bf16.mxu0 0
    %150 = vmatpush1.bf16.msra.mxu0 %v127
    %151 = vmatprep.subr.bf16.mxu0 0
    %152 = vmatpush1.bf16.msra.mxu0 %v128
    %153 = vmatprep.subr.bf16.mxu0 0
    %154 = vmatpush1.bf16.msra.mxu0 0
    %155 = vmatprep.subr.bf16.mxu0 0
    %156 = vmatpush1.bf16.msra.mxu0 0
    %157 = vmatprep.subr.bf16.mxu0 0
    %158 = vmatpush1.bf16.msra.mxu0 0
    %159 = vmatprep.subr.bf16.mxu0 0
    %160 = vmatpush1.bf16.msra.mxu0 0
    %161 = vmatprep.subr.bf16.mxu0 0
    %162 = vmatpush1.bf16.msra.mxu0 0
    %163 = vmatprep.subr.bf16.mxu0 0
    %164 = vmatpush1.bf16.msra.mxu0 0
    %165 = vmatprep.subr.bf16.mxu0 0
    %166 = vmatpush1.bf16.msra.mxu0 0
    %167 = vmatprep.subr.bf16.mxu0 0
    %168 = vmatpush1.bf16.msra.mxu0 0
    %169 = vmatprep.mubr.bf16.mxu0 0
    %170 = vmatmul.mubr.bf16.gmra.mrb[0].mxu0 %v81
    %v171 = vpop.f32.mrb[0].mxu0
    %v172 = vadd.f32 0.0, %v171
    %v173 = vpop.f32.mrb[0].mxu0
    %v174 = vpop.f32.mrb[0].mxu0
    %v175 = vadd.f32 0.0, %v174
    %v176 = vpop.f32.mrb[0].mxu0
    %177 = vmatprep.mubr.bf16.mxu0 0
    %178 = vmatmul.mubr.bf16.gmra.mrb[0].mxu0 %v82
    %v179 = vpop.f32.mrb[0].mxu0
    %v180 = vadd.f32 0.0, %v179
    %v181 = vpop.f32.mrb[0].mxu0
    %v182 = vpop.f32.mrb[0].mxu0
    %v183 = vadd.f32 0.0, %v182
    %v184 = vpop.f32.mrb[0].mxu0
    %185 = vmatprep.mubr.bf16.mxu0 0
    %186 = vmatmul.mubr.bf16.gmra.mrb[0].mxu0 %v83
    %v187 = vpop.f32.mrb[0].mxu0
    %v188 = vadd.f32 0.0, %v187
    %v189 = vpop.f32.mrb[0].mxu0
    %v190 = vpop.f32.mrb[0].mxu0
    %v191 = vadd.f32 0.0, %v190
    %v192 = vpop.f32.mrb[0].mxu0
    %193 = vmatprep.mubr.bf16.mxu0 0
    %194 = vmatmul.mubr.bf16.gmra.mrb[0].mxu0 %v84
    %v195 = vpop.f32.mrb[0].mxu0
    %v196 = vadd.f32 0.0, %v195
    %v197 = vpop.f32.mrb[0].mxu0
    %v198 = vpop.f32.mrb[0].mxu0
    %v199 = vadd.f32 0.0, %v198
    %v200 = vpop.f32.mrb[0].mxu0
    %201 = vdwg.mxu0
    %v202 = vpack.c.bf16 %v175, %v172
    %v203 = vpack.c.bf16 %v183, %v180
    %v204 = vpack.c.bf16 %v191, %v188
    %v205 = vpack.c.bf16 %v199, %v196
    %v210 = vunpack.c.l.b16 %v202
    %v211 = vunpack.c.h.b16 %v202
    %v212 = vunpack.c.l.b16 %v203
    %v213 = vunpack.c.h.b16 %v203
    %v214 = vunpack.c.l.b16 %v204
    %v215 = vunpack.c.h.b16 %v204
    %v216 = vunpack.c.l.b16 %v205
    %v217 = vunpack.c.h.b16 %v205
    %v218 = vpack.c.b16 %v210, %v210
    %v219 = vpack.c.b16 %v211, %v211
    %v220 = vpack.c.b16 %v212, %v212
    %v221 = vpack.c.b16 %v213, %v213
    %v222 = vpack.c.b16 %v214, %v214
    %v223 = vpack.c.b16 %v215, %v215
    %v224 = vpack.c.b16 %v216, %v216
    %v225 = vpack.c.b16 %v217, %v217
    %234 = vst [vmem:[#allocation7] sm:$0xf] %v218
    %235 = vst [vmem:[#allocation7 + $0x4] sm:$0xf] %v219
    %236 = vst [vmem:[#allocation7 + $0x8] sm:$0xf] %v220
    %237 = vst [vmem:[#allocation7 + $0xc] sm:$0xf] %v221
    %238 = vst [vmem:[#allocation7 + $0x10] sm:$0xf] %v222
    %239 = vst [vmem:[#allocation7 + $0x14] sm:$0xf] %v223
    %240 = vst [vmem:[#allocation7 + $0x18] sm:$0xf] %v224
    %241 = vst [vmem:[#allocation7 + $0x1c] sm:$0xf] %v225
    // Predicated region
    $region18: #{tpu_custom_call.1} parent=1 // pred_check
      _
    $region19: #{tpu_custom_call.1} parent=1 // pred_check_branch
      %243 = sbr.rel (0) target = $region21
    $region20: #{tpu_custom_call.1} parent=1 // pred_region
      %s245 = ssub.s32 512, 512
      %246 = vsyncadd [#allocation4], %s245
      %s247 = sshll.u32 [#allocation7], 4
      %s248 = int_to_ptr.vmem [resolvable:$true] %s247
      %253 = dma.vmem_to_hbm [thread:$0]  %s248, 512, %s2, [#allocation4], 64, 64, 4
    $region21: #{tpu_custom_call.1} parent=1 // pred_fallthru
      _
    // Predicated region
    $region22: #{tpu_custom_call.1} parent=1 // pred_check
      _
    $region23: #{tpu_custom_call.1} parent=1 // pred_check_branch
      %255 = sbr.rel (0) target = $region25
    $region24: #{tpu_custom_call.1} parent=1 // pred_region
      %256 = dma.done [#allocation4], 512
    $region25: #{tpu_custom_call.1} parent=1 // pred_fallthru
      _
    %257 = vsyncpa [#allocation3], 1
    %258 = vsyncpa [#allocation6], 1
    %259 = vsyncpa [#allocation4], 1

</llo_original>
